<compile_context>
chip_gen: v6e
topology: v6e:2x2x1
jax: 0.10.0
libtpu: 0.0.40
codegen_flags: <defaults>
</compile_context>

<pallas_src>
import functools
import math

import numpy as np
import jax
import jax.numpy as jnp
from jax import lax
from jax.experimental import pallas as pl
from jax.experimental.pallas import tpu as pltpu

_LANES = 128
_VMEM_LIMIT = 48 * 1024 * 1024        # <= physical VMEM on every generation (v7x: 64 MiB)
_FUSED_MAX_BYTES = 512 * 1024         # x + y below this -> single fused kernel
_POOL_TILE_BYTES = 8 * 1024 * 1024    # stage-1 x-tile budget
_SCALE_TILE_ELEMS = 1024 * 1024       # stage-2 y-tile budget (~4 MiB f32 / 2 MiB bf16)


def _round_up(v, m):
    return ((v + m - 1) // m) * m


def _round_down(v, m):
    return (v // m) * m


def _pick_row_tile(rows, budget_rows, cap=4096, want_two_blocks=True):
    """Row-tile size: multiple of 8 (or full), within budget, >=2 blocks when possible (v7x)."""
    if rows <= 8:
        return rows
    tr = max(8, min(_round_down(budget_rows, 8), cap, _round_down(rows, 8)))
    if want_two_blocks and pl.cdiv(rows, tr) < 2:
        tr = max(8, _round_up(pl.cdiv(rows, 2), 8))
        tr = min(tr, _round_down(rows, 8))
    return tr


# ---------------------------------------------------------------------------
# Fused path (small problems): pool + MLP + scale in one gridless kernel
# ---------------------------------------------------------------------------
def _fused_kernel(x_ref, y_ref, w1t_ref, w2t_ref, o_ref, *, inv_l):
    pooled = jnp.sum(x_ref[...].astype(jnp.float32), axis=-1) * inv_l        # (B, C)
    h = jnp.dot(pooled, w1t_ref[...].astype(jnp.float32),
                preferred_element_type=jnp.float32)                          # (B, C//r)
    h = jnp.maximum(h, 0.0)
    z = jnp.dot(h, w2t_ref[...].astype(jnp.float32),
                preferred_element_type=jnp.float32)                          # (B, C)
    s = jax.nn.sigmoid(z)
    o_ref[...] = y_ref[...] * s[:, :, None].astype(o_ref.dtype)


def _cross_se_fused(x, y, w1, w2):
    B, C, L = x.shape
    return pl.pallas_call(
        functools.partial(_fused_kernel, inv_l=1.0 / float(L)),
        out_shape=jax.ShapeDtypeStruct((B, C, L), y.dtype),
        in_specs=[pl.BlockSpec(memory_space=pltpu.MemorySpace.VMEM)] * 4,
        out_specs=pl.BlockSpec(memory_space=pltpu.MemorySpace.VMEM),
        compiler_params=pltpu.CompilerParams(vmem_limit_bytes=_VMEM_LIMIT),
    )(x, y, w1.T, w2.T)     # pass weights pre-transposed (tiny) -> vanilla in-kernel matmuls


# ---------------------------------------------------------------------------
# Stage 1: global average pool over L on the (B*C, L) view  ->  (B*C, 1) f32
# ---------------------------------------------------------------------------
def _pool_single_kernel(x_ref, p_ref, *, inv_l):
    # Whole row resident: one load + a single cross-lane reduce per row tile.
    p_ref[...] = jnp.sum(x_ref[...].astype(jnp.float32), axis=-1, keepdims=True) * inv_l


def _pool_multi_kernel(x_ref, p_ref, acc_ref, *, L, TL, inv_l, mask_l, n_chunks):
    k = pl.program_id(1)

    @pl.when(k == 0)
    def _():
        acc_ref[...] = jnp.zeros_like(acc_ref)

    xb = x_ref[...]                                            # (TR, TL)
    if mask_l:  # static flag; only emitted when L % TL != 0
        col = k * TL + lax.broadcasted_iota(jnp.int32, xb.shape, 1)
        xb = jnp.where(col < L, xb, jnp.zeros((), xb.dtype))
    xf = xb.astype(jnp.float32)

    # Lane-resident partial sums: plain VPU adds of 128-wide, 128-aligned lane chunks.
    # The single (XLU) cross-lane reduce is deferred to the last L-step.
    acc = acc_ref[...]
    for c in range(n_chunks):
        acc = acc + xf[:, c * _LANES:(c + 1) * _LANES]
    acc_ref[...] = acc

    @pl.when(k == pl.num_programs(1) - 1)
    def _():
        p_ref[...] = jnp.sum(acc_ref[...], axis=-1, keepdims=True) * inv_l


def _avg_pool_rows(x2):
    BC, L = x2.shape
    itemsize = jnp.dtype(x2.dtype).itemsize
    budget_elems = _POOL_TILE_BYTES // itemsize
    inv_l = 1.0 / float(L)

    if L * 8 <= budget_elems:
        # A full row fits comfortably: single L-step per row tile, no accumulator needed.
        TL = L
        TR = _pick_row_tile(BC, budget_elems // max(TL, 1))
        return pl.pallas_call(
            functools.partial(_pool_single_kernel, inv_l=inv_l),
            out_shape=jax.ShapeDtypeStruct((BC, 1), jnp.float32),
            grid_spec=pltpu.PrefetchScalarGridSpec(
                num_scalar_prefetch=0,
                grid=(pl.cdiv(BC, TR),),
                in_specs=[pl.BlockSpec((TR, TL), lambda r: (r, 0))],
                out_specs=pl.BlockSpec((TR, 1), lambda r: (r, 0)),
            ),
            compiler_params=pltpu.CompilerParams(
                dimension_semantics=("parallel",),
                vmem_limit_bytes=_VMEM_LIMIT,
            ),
        )(x2)

    # Very long rows: tile L as well (reduction axis last, "arbitrary").
    TL = min(_round_down(L, _LANES), 4096)
    TR = _pick_row_tile(BC, budget_elems // TL)
    mask_l = (L % TL) != 0
    return pl.pallas_call(
        functools.partial(_pool_multi_kernel, L=L, TL=TL, inv_l=inv_l,
                          mask_l=mask_l, n_chunks=TL // _LANES),
        out_shape=jax.ShapeDtypeStruct((BC, 1), jnp.float32),
        grid_spec=pltpu.PrefetchScalarGridSpec(
            num_scalar_prefetch=0,
            grid=(pl.cdiv(BC, TR), pl.cdiv(L, TL)),
            in_specs=[pl.BlockSpec((TR, TL), lambda r, k: (r, k))],
            out_specs=pl.BlockSpec((TR, 1), lambda r, k: (r, 0)),
            scratch_shapes=[pltpu.VMEM((TR, _LANES), jnp.float32)],
        ),
        compiler_params=pltpu.CompilerParams(
            dimension_semantics=("parallel", "arbitrary"),
            vmem_limit_bytes=_VMEM_LIMIT,
        ),
    )(x2)


def _se_gate(pooled, w1, w2):
    """Tiny SE MLP on the pooled (B, C) activations (plain XLA per review: negligible FLOPs)."""
    h = jnp.maximum(jnp.dot(pooled, w1.astype(jnp.float32).T,
                            precision=lax.Precision.HIGHEST), 0.0)
    z = jnp.dot(h, w2.astype(jnp.float32).T, precision=lax.Precision.HIGHEST)
    return jax.nn.sigmoid(z)


# ---------------------------------------------------------------------------
# Stage 2: out = y * s   (HBM-bandwidth-bound streaming pass)
# ---------------------------------------------------------------------------
def _scale_folded_kernel(y_ref, s_ref, e_ref, o_ref):
    # y_ref: (TR, W) lane-dense; s_ref: (TR, G) per-channel gates.  Expand each gate across
    # its L positions with a tiny matmul against the constant 0/1 expansion matrix E (G, W);
    # the MXU is otherwise idle in this mem-bound pass.
    scale = jnp.dot(s_ref[...], e_ref[...], preferred_element_type=jnp.float32)
    o_ref[...] = y_ref[...] * scale.astype(o_ref.dtype)


def _scale_rows_kernel(y_ref, s_ref, o_ref):
    # y_ref: (TR, TL); s_ref: (TR, 1) -- gate cast once per row, broadcast over lanes.
    o_ref[...] = y_ref[...] * s_ref[...].astype(o_ref.dtype)


def _apply_scale(y, s):
    B, C, L = y.shape
    BC = B * C
    itemsize = jnp.dtype(y.dtype).itemsize
    # Gate / expansion matrix in y's dtype when y is low precision (cheap bf16 MXU passes on
    # v7x); keep f32 when y is f32 so the gate is not degraded.
    gate_dtype = y.dtype if itemsize < 4 else jnp.float32

    g = math.gcd(L, _LANES)
    W = (L // g) * _LANES          # lcm(L, 128): lane-dense folded row width
    G = W // L                     # gate values per folded row
    use_fold = (L % _LANES != 0) and (W <= 2048) and (BC % G == 0)

    if use_fold:
        NR = (BC * L) // W
        y2 = y.reshape(NR, W)                              # free, fully contiguous reshape
        s2 = s.reshape(NR, G).astype(gate_dtype)           # folded row r -> rows r*G..r*G+G-1
        e_np = (np.arange(W)[None, :] // L == np.arange(G)[:, None]).astype(np.float32)
        E = jnp.asarray(e_np, dtype=gate_dtype)            # (G, W) constant, resident
        TR = _pick_row_tile(NR, _SCALE_TILE_ELEMS // W, cap=4096)
        out = pl.pallas_call(
            _scale_folded_kernel,
            out_shape=jax.ShapeDtypeStruct((NR, W), y.dtype),
            grid_spec=pltpu.PrefetchScalarGridSpec(
                num_scalar_prefetch=0,
                grid=(pl.cdiv(NR, TR),),
                in_specs=[
                    pl.BlockSpec((TR, W), lambda i: (i, 0)),
                    pl.BlockSpec((TR, G), lambda i: (i, 0)),
                    pl.BlockSpec((G, W), lambda i: (0, 0)),
                ],
                out_specs=pl.BlockSpec((TR, W), lambda i: (i, 0)),
            ),
            compiler_params=pltpu.CompilerParams(
                dimension_semantics=("parallel",),
                vmem_limit_bytes=_VMEM_LIMIT,
            ),
        )(y2, s2, E)
        return out.reshape(B, C, L)

    # General path: (B*C, L) rows.  For L a multiple of 128 this is already lane-dense.
    # TODO(synk): lane-dense repack for small L that fails the fold conditions
    # (BC % G != 0 or lcm(L, 128) > 2048); those shapes currently take masked stores here.
    y2 = y.reshape(BC, L)
    s2 = s.reshape(BC, 1)
    TL = L if L <= _LANES else min(_round_down(L, _LANES), 4096)
    TR = _pick_row_tile(BC, _SCALE_TILE_ELEMS // TL, cap=4096,
                        want_two_blocks=pl.cdiv(L, TL) < 2)
    out = pl.pallas_call(
        _scale_rows_kernel,
        out_shape=jax.ShapeDtypeStruct((BC, L), y.dtype),
        grid_spec=pltpu.PrefetchScalarGridSpec(
            num_scalar_prefetch=0,
            grid=(pl.cdiv(BC, TR), pl.cdiv(L, TL)),
            in_specs=[
                pl.BlockSpec((TR, TL), lambda i, j: (i, j)),
                pl.BlockSpec((TR, 1), lambda i, j: (i, 0)),
            ],
            out_specs=pl.BlockSpec((TR, TL), lambda i, j: (i, j)),
        ),
        compiler_params=pltpu.CompilerParams(
            dimension_semantics=("parallel", "parallel"),
            vmem_limit_bytes=_VMEM_LIMIT,
        ),
    )(y2, s2)
    return out.reshape(B, C, L)


# ---------------------------------------------------------------------------
# Public entry point (CrossSE_1d.forward)
# ---------------------------------------------------------------------------
def cross_se_1d(x, y, w1, w2):
    """x, y: (B, C, L); w1: (C//r, C); w2: (C, C//r).  Returns y * SE(x) in y's dtype."""
    B, C, L = x.shape
    assert y.shape == (B, C, L)
    nbytes = (x.size * jnp.dtype(x.dtype).itemsize
              + y.size * jnp.dtype(y.dtype).itemsize)
    if nbytes <= _FUSED_MAX_BYTES:
        return _cross_se_fused(x, y, w1, w2)
    pooled = _avg_pool_rows(x.reshape(B * C, L)).reshape(B, C)   # (B, C) f32
    s = _se_gate(pooled, w1, w2)                                 # (B, C) f32 gate
    return _apply_scale(y, s)


def cross_se_1d_reference(x, y, w1, w2):
    pooled = jnp.mean(x.astype(jnp.float32), axis=-1)
    h = jnp.maximum(jnp.dot(pooled, w1.astype(jnp.float32).T,
                            precision=lax.Precision.HIGHEST), 0.0)
    s = jax.nn.sigmoid(jnp.dot(h, w2.astype(jnp.float32).T,
                               precision=lax.Precision.HIGHEST))
    return (y.astype(jnp.float32) * s[:, :, None]).astype(y.dtype)


if __name__ == "__main__":
    key = jax.random.PRNGKey(0)

    def make_case(k, B, C, L, R, dtype=jnp.float32):
        kx, ky, kw1, kw2 = jax.random.split(k, 4)
        x = jax.random.normal(kx, (B, C, L), jnp.float32).astype(dtype)
        y = jax.random.normal(ky, (B, C, L), jnp.float32).astype(dtype)
        w1 = jax.random.normal(kw1, (C // R, C), jnp.float32) * (1.0 / math.sqrt(C))
        w2 = jax.random.normal(kw2, (C, C // R), jnp.float32) * (1.0 / math.sqrt(C // R))
        return x, y, w1, w2

    cases = [
        # (name,                          B,  C,   L,    R, atol)
        ("fused small (module-typical)",  2,  32,  16,   4, 1e-4),
        ("long-L row path",               2,  32,  2048, 4, 2e-5),
        ("small-L folded path",           32, 256, 16,   4, 2e-5),
        ("generalized fold (L=96)",       16, 64,  96,   4, 2e-5),
    ]
    for name, B, C, L, R, tol in cases:
        key, sub = jax.random.split(key)
        x, y, w1, w2 = make_case(sub, B, C, L, R)
        out = jax.block_until_ready(cross_se_1d(x, y, w1, w2))
        ref = cross_se_1d_reference(x, y, w1, w2)
        assert out.shape == (B, C, L) and out.dtype == y.dtype, name
        err = float(jnp.max(jnp.abs(out.astype(jnp.float32) - ref.astype(jnp.float32))))
        assert err <= tol, f"{name}: max abs err {err} > {tol}"

    print("KERNEL_OK")
</pallas_src>

<mosaic_0001>
module attributes {stable_mosaic.version = 11 : i64} {
  func.func @_fused_kernel(%arg0: memref<2x32x16xf32, #tpu.memory_space<vmem>>, %arg1: memref<2x32x16xf32, #tpu.memory_space<vmem>>, %arg2: memref<32x8xf32, #tpu.memory_space<vmem>>, %arg3: memref<8x32xf32, #tpu.memory_space<vmem>>, %arg4: memref<2x32x16xf32, #tpu.memory_space<vmem>>) attributes {dimension_semantics = [], scalar_prefetch = 0 : i64, scratch_operands = 0 : i64, tpu.core_type = #tpu.core_type<tc>} {
    %c0 = arith.constant 0 : index
    %c0_0 = arith.constant 0 : index
    %c0_1 = arith.constant 0 : index
    %0 = vector.load %arg0[%c0, %c0_0, %c0_1] : memref<2x32x16xf32, #tpu.memory_space<vmem>>, vector<2x32x16xf32>
    %cst = arith.constant dense<0.000000e+00> : vector<2x32xf32>
    %1 = vector.multi_reduction <add>, %0, %cst [2] : vector<2x32x16xf32> to vector<2x32xf32>
    %cst_2 = arith.constant 6.250000e-02 : f32
    %2 = vector.broadcast %cst_2 : f32 to vector<2x32xf32>
    %3 = arith.mulf %1, %2 : vector<2x32xf32>
    %c0_3 = arith.constant 0 : index
    %c0_4 = arith.constant 0 : index
    %4 = vector.load %arg2[%c0_3, %c0_4] : memref<32x8xf32, #tpu.memory_space<vmem>>, vector<32x8xf32>
    %cst_5 = arith.constant dense<0.000000e+00> : vector<2x8xf32>
    %5 = tpu.matmul %3, %4, %cst_5 {dimension_numbers = #tpu.dot_dimension_numbers<[1], [0], [0], [1], [0, 0, 1, 1], [], []>} : vector<2x32xf32>, vector<32x8xf32>, vector<2x8xf32> -> vector<2x8xf32>
    %cst_6 = arith.constant 0.000000e+00 : f32
    %6 = vector.broadcast %cst_6 : f32 to vector<2x8xf32>
    %7 = arith.maximumf %5, %6 : vector<2x8xf32>
    %c0_7 = arith.constant 0 : index
    %c0_8 = arith.constant 0 : index
    %8 = vector.load %arg3[%c0_7, %c0_8] : memref<8x32xf32, #tpu.memory_space<vmem>>, vector<8x32xf32>
    %cst_9 = arith.constant dense<0.000000e+00> : vector<2x32xf32>
    %9 = tpu.matmul %7, %8, %cst_9 {dimension_numbers = #tpu.dot_dimension_numbers<[1], [0], [0], [1], [0, 0, 1, 1], [], []>} : vector<2x8xf32>, vector<8x32xf32>, vector<2x32xf32> -> vector<2x32xf32>
    %10 = arith.negf %9 : vector<2x32xf32>
    %11 = math.exp %10 : vector<2x32xf32>
    %cst_10 = arith.constant 1.000000e+00 : f32
    %12 = vector.broadcast %cst_10 : f32 to vector<2x32xf32>
    %13 = arith.addf %12, %11 : vector<2x32xf32>
    %14 = arith.divf %12, %13 : vector<2x32xf32>
    %c0_11 = arith.constant 0 : index
    %c0_12 = arith.constant 0 : index
    %c0_13 = arith.constant 0 : index
    %15 = vector.load %arg1[%c0_11, %c0_12, %c0_13] : memref<2x32x16xf32, #tpu.memory_space<vmem>>, vector<2x32x16xf32>
    %16 = vector.shape_cast %14 : vector<2x32xf32> to vector<2x32x1xf32>
    %17 = vector.broadcast %16 : vector<2x32x1xf32> to vector<2x32x16xf32>
    %18 = arith.mulf %15, %17 : vector<2x32x16xf32>
    %c0_14 = arith.constant 0 : index
    %c0_15 = arith.constant 0 : index
    %c0_16 = arith.constant 0 : index
    %19 = vector.load %arg4[%c0_14, %c0_15, %c0_16] : memref<2x32x16xf32, #tpu.memory_space<vmem>>, vector<2x32x16xf32>
    tpu.vector_store %arg4[%c0_14, %c0_15, %c0_16], %18 {strides = array<i32>} : memref<2x32x16xf32, #tpu.memory_space<vmem>>, vector<2x32x16xf32>,
    return
  }
}

</mosaic_0001>

<llo_original>
// kernel: tpu_custom_call.1
$region0: #{tpu_custom_call.1}
  #allocation0 [shape = 'u32[]', space=smem, size = 0x4, offset = 0x4, fixed_abs, tag = 'smem constant byte address 0x4 - core index']
  #allocation1 [shape = 'u32[144,128]{1,0:T(1,128)}', space=vmem, size = 0x12000, scoped, tag = 'internal scratch']
  %s0 = inlined_call_operand.vmem [shape: f32[2,32,16], index: 0, kind: input, shape index: {}]
  %s1 = inlined_call_operand.vmem [shape: f32[2,32,16], index: 1, kind: input, shape index: {}]
  %s2 = inlined_call_operand.vmem [shape: f32[32,8], index: 2, kind: input, shape index: {}]
  %s3 = inlined_call_operand.vmem [shape: f32[8,32], index: 3, kind: input, shape index: {}]
  %s4 = inlined_call_operand.vmem [shape: f32[2,32,16], index: 4, kind: output, shape index: {}]
  %s5 = sld [smem:[#allocation0]]
  $region26: #{tpu_custom_call.1} parent=0
    _
  %s7 = ssub.s32 1, %s5
  %s8 = scalar_select 0, %s7, %s5
  // Predicated region
  $region2: #{tpu_custom_call.1} parent=0 // pred_check
    _
  $region3: #{tpu_custom_call.1} parent=0 // pred_check_branch
    %10 = sbr.rel (0) target = $region5
  $region4: #{tpu_custom_call.1} parent=0 // pred_region
    _
  $region5: #{tpu_custom_call.1} parent=0 // pred_fallthru
    _
  // Predicated region
  $region6: #{tpu_custom_call.1} parent=0 // pred_check
    _
  $region7: #{tpu_custom_call.1} parent=0 // pred_check_branch
    %12 = sbr.rel (0) target = $region9
  $region8: #{tpu_custom_call.1} parent=0 // pred_region
    _
  $region9: #{tpu_custom_call.1} parent=0 // pred_fallthru
    _
  // Predicated region
  $region10: #{tpu_custom_call.1} parent=0 // pred_check
    _
  $region11: #{tpu_custom_call.1} parent=0 // pred_check_branch
    %14 = sbr.rel (0) target = $region13
  $region12: #{tpu_custom_call.1} parent=0 // pred_region
    _
  $region13: #{tpu_custom_call.1} parent=0 // pred_fallthru
    _
  // Predicated region
  $region14: #{tpu_custom_call.1} parent=0 // pred_check
    _
  $region15: #{tpu_custom_call.1} parent=0 // pred_check_branch
    %16 = sbr.rel (0) target = $region17
  $region16: #{tpu_custom_call.1} parent=0 // pred_region
    _
  $region17: #{tpu_custom_call.1} parent=0 // pred_fallthru
    _
  %v17 = vld [vmem:[%s0] sm:$0xff]
  %v18 = vld [vmem:[%s0 + $0x8] sm:$0xff]
  %v19 = vld [vmem:[%s0 + $0x10] sm:$0xff]
  %v20 = vld [vmem:[%s0 + $0x18] sm:$0xff]
  %v21 = vld [vmem:[%s0 + $0x20] sm:$0xff]
  %v22 = vld [vmem:[%s0 + $0x28] sm:$0xff]
  %v23 = vld [vmem:[%s0 + $0x30] sm:$0xff]
  %v24 = vld [vmem:[%s0 + $0x38] sm:$0xff]
  %vm25 = vcmask 130048
  %v26 = vsel %vm25, %v17, 0.0
  %27 = vadd.xlane.f32.xlu0 %v26
  %v28 = vpop.xlane.xlu0 %27
  %v29 = vsel %vm25, %v18, 0.0
  %30 = vadd.xlane.f32.xlu0 %v29
  %v31 = vpop.xlane.xlu0 %30
  %v32 = vsel %vm25, %v19, 0.0
  %33 = vadd.xlane.f32.xlu0 %v32
  %v34 = vpop.xlane.xlu0 %33
  %v35 = vsel %vm25, %v20, 0.0
  %36 = vadd.xlane.f32.xlu0 %v35
  %v37 = vpop.xlane.xlu0 %36
  %v38 = vsel %vm25, %v21, 0.0
  %39 = vadd.xlane.f32.xlu0 %v38
  %v40 = vpop.xlane.xlu0 %39
  %v41 = vsel %vm25, %v22, 0.0
  %42 = vadd.xlane.f32.xlu0 %v41
  %v43 = vpop.xlane.xlu0 %42
  %v44 = vsel %vm25, %v23, 0.0
  %45 = vadd.xlane.f32.xlu0 %v44
  %v46 = vpop.xlane.xlu0 %45
  %v47 = vsel %vm25, %v24, 0.0
  %48 = vadd.xlane.f32.xlu0 %v47
  %v49 = vpop.xlane.xlu0 %48
  %v50 = vmul.f32 %v28, 0.0625
  %v51 = vmul.f32 %v31, 0.0625
  %v52 = vmul.f32 %v34, 0.0625
  %v53 = vmul.f32 %v37, 0.0625
  %v54 = vmul.f32 %v40, 0.0625
  %v55 = vmul.f32 %v43, 0.0625
  %v56 = vmul.f32 %v46, 0.0625
  %v57 = vmul.f32 %v49, 0.0625
  %v58 = vld [vmem:[%s2] sm:$0xff]
  %v59 = vld [vmem:[%s2 + $0x8] sm:$0xff]
  %v60 = vld [vmem:[%s2 + $0x10] sm:$0xff]
  %v61 = vld [vmem:[%s2 + $0x18] sm:$0xff]
  %v70 = vlaneseq
  %v71 = vand.u32 %v70, 127
  %v72 = vlaneseq
  %v73 = vshrl.u32 %v72, 7
  %v74 = vsub.s32 %v71, %v73
  %v75 = vrot.slane %v50, %v74
  %v76 = vadd.s32 %v71, 4294967288
  %v77 = vlaneseq
  %v78 = vshrl.u32 %v77, 7
  %v79 = vsub.s32 %v76, %v78
  %v80 = vrot.slane %v51, %v79
  %vm81 = vcmask 130112
  %v82 = vsel %vm81, %v80, %v75
  %v83 = vadd.s32 %v71, 4294967280
  %v84 = vlaneseq
  %v85 = vshrl.u32 %v84, 7
  %v86 = vsub.s32 %v83, %v85
  %v87 = vrot.slane %v52, %v86
  %vm88 = vcmask 195712
  %v89 = vsel %vm88, %v87, %v82
  %v90 = vadd.s32 %v71, 4294967272
  %v91 = vlaneseq
  %v92 = vshrl.u32 %v91, 7
  %v93 = vsub.s32 %v90, %v92
  %v94 = vrot.slane %v53, %v93
  %vm95 = vcmask 261312
  %v96 = vsel %vm95, %v94, %v89
  %v97 = vlaneseq
  %v98 = vshrl.u32 %v97, 7
  %v99 = vsub.s32 %v71, %v98
  %v100 = vrot.slane %v54, %v99
  %v101 = vlaneseq
  %v102 = vshrl.u32 %v101, 7
  %v103 = vsub.s32 %v76, %v102
  %v104 = vrot.slane %v55, %v103
  %v105 = vsel %vm81, %v104, %v100
  %v106 = vlaneseq
  %v107 = vshrl.u32 %v106, 7
  %v108 = vsub.s32 %v83, %v107
  %v109 = vrot.slane %v56, %v108
  %v110 = vsel %vm88, %v109, %v105
  %v111 = vlaneseq
  %v112 = vshrl.u32 %v111, 7
  %v113 = vsub.s32 %v90, %v112
  %v114 = vrot.slane %v57, %v113
  %v115 = vsel %vm95, %v114, %v110
  %vm116 = vcmask 1041409
  %v117 = vsel %vm116, %v115, %v96
  %vm118 = vcmask 261120
  %v119 = vsel %vm118, %v117, 0
  %121 = vmatprep.subr.mxu0 0.0
  %122 = vmatpush1.msra.mxu0 0.0
  %123 = vmatprep.subr.mxu0 0.0
  %124 = vmatpush1.msra.mxu0 0.0
  %125 = vmatprep.subr.mxu0 0.0
  %126 = vmatpush1.msra.mxu0 0.0
  %127 = vmatprep.subr.mxu0 0.0
  %128 = vmatpush1.msra.mxu0 0.0
  %129 = vmatprep.subr.mxu0 0.0
  %130 = vmatpush1.msra.mxu0 0.0
  %131 = vmatprep.subr.mxu0 0.0
  %132 = vmatpush1.msra.mxu0 0.0
  %133 = vmatprep.subr.mxu0 0.0
  %134 = vmatpush1.msra.mxu0 0.0
  %135 = vmatprep.subr.mxu0 0.0
  %136 = vmatpush1.msra.mxu0 0.0
  %137 = vmatprep.subr.mxu0 0.0
  %138 = vmatpush1.msra.mxu0 0.0
  %139 = vmatprep.subr.mxu0 0.0
  %140 = vmatpush1.msra.mxu0 0.0
  %141 = vmatprep.subr.mxu0 0.0
  %142 = vmatpush1.msra.mxu0 0.0
  %143 = vmatprep.subr.mxu0 0.0
  %144 = vmatpush1.msra.mxu0 0.0
  %145 = vmatprep.subr.mxu0 0.0
  %146 = vmatpush1.msra.mxu0 %v61
  %147 = vmatprep.subr.mxu0 0.0
  %148 = vmatpush1.msra.mxu0 %v60
  %149 = vmatprep.subr.mxu0 0.0
  %150 = vmatpush1.msra.mxu0 %v59
  %151 = vmatprep.subr.mxu0 0.0
  %152 = vmatpush1.msra.mxu0 %v58
  %153 = vmatprep.subr.mxu0 0.0
  %154 = vmatpush2.msra.mxu0 0.0
  %155 = vmatprep.subr.mxu0 0.0
  %156 = vmatpush2.msra.mxu0 0.0
  %157 = vmatprep.subr.mxu0 0.0
  %158 = vmatpush2.msra.mxu0 0.0
  %159 = vmatprep.subr.mxu0 0.0
  %160 = vmatpush2.msra.mxu0 0.0
  %161 = vmatprep.subr.mxu0 0.0
  %162 = vmatpush2.msra.mxu0 0.0
  %163 = vmatprep.subr.mxu0 0.0
  %164 = vmatpush2.msra.mxu0 0.0
  %165 = vmatprep.subr.mxu0 0.0
  %166 = vmatpush2.msra.mxu0 0.0
  %167 = vmatprep.subr.mxu0 0.0
  %168 = vmatpush2.msra.mxu0 0.0
  %169 = vmatprep.subr.mxu0 0.0
  %170 = vmatpush2.msra.mxu0 0.0
  %171 = vmatprep.subr.mxu0 0.0
  %172 = vmatpush2.msra.mxu0 0.0
  %173 = vmatprep.subr.mxu0 0.0
  %174 = vmatpush2.msra.mxu0 0.0
  %175 = vmatprep.subr.mxu0 0.0
  %176 = vmatpush2.msra.mxu0 0.0
  %177 = vmatprep.subr.mxu0 0.0
  %178 = vmatpush2.msra.mxu0 0.0
  %179 = vmatprep.subr.mxu0 0.0
  %180 = vmatpush2.msra.mxu0 0.0
  %181 = vmatprep.subr.mxu0 0.0
  %182 = vmatpush2.msra.mxu0 0.0
  %183 = vmatprep.subr.mxu0 0.0
  %184 = vmatpush2.msra.mxu0 0.0
  %185 = vmatprep.mubr.f32.mxu0 0.0
  %186 = vmatmul.mubr.f32.gmra.mxu0 %v119
  %v187 = vpop.f32.mrf.mxu0
  %v188 = vadd.f32 0.0, %v187
  %v189 = vpop.f32.mrf.mxu0
  %190 = vdwg.mxu0
  %v191 = vmax.f32 %v188, 0.0
  %v192 = vld [vmem:[%s3] sm:$0xff]
  %vm193 = vcmask 64512
  %v195 = vsel %vm193, %v191, 0
  %197 = vmatprep.subr.mxu0 0.0
  %198 = vmatpush1.msra.mxu0 0.0
  %199 = vmatprep.subr.mxu0 0.0
  %200 = vmatpush1.msra.mxu0 0.0
  %201 = vmatprep.subr.mxu0 0.0
  %202 = vmatpush1.msra.mxu0 0.0
  %203 = vmatprep.subr.mxu0 0.0
  %204 = vmatpush1.msra.mxu0 0.0
  %205 = vmatprep.subr.mxu0 0.0
  %206 = vmatpush1.msra.mxu0 0.0
  %207 = vmatprep.subr.mxu0 0.0
  %208 = vmatpush1.msra.mxu0 0.0
  %209 = vmatprep.subr.mxu0 0.0
  %210 = vmatpush1.msra.mxu0 0.0
  %211 = vmatprep.subr.mxu0 0.0
  %212 = vmatpush1.msra.mxu0 0.0
  %213 = vmatprep.subr.mxu0 0.0
  %214 = vmatpush1.msra.mxu0 0.0
  %215 = vmatprep.subr.mxu0 0.0
  %216 = vmatpush1.msra.mxu0 0.0
  %217 = vmatprep.subr.mxu0 0.0
  %218 = vmatpush1.msra.mxu0 0.0
  %219 = vmatprep.subr.mxu0 0.0
  %220 = vmatpush1.msra.mxu0 0.0
  %221 = vmatprep.subr.mxu0 0.0
  %222 = vmatpush1.msra.mxu0 0.0
  %223 = vmatprep.subr.mxu0 0.0
  %224 = vmatpush1.msra.mxu0 0.0
  %225 = vmatprep.subr.mxu0 0.0
  %226 = vmatpush1.msra.mxu0 0.0
  %227 = vmatprep.subr.mxu0 0.0
  %228 = vmatpush1.msra.mxu0 %v192
  %229 = vmatprep.subr.mxu0 0.0
  %230 = vmatpush2.msra.mxu0 0.0
  %231 = vmatprep.subr.mxu0 0.0
  %232 = vmatpush2.msra.mxu0 0.0
  %233 = vmatprep.subr.mxu0 0.0
  %234 = vmatpush2.msra.mxu0 0.0
  %235 = vmatprep.subr.mxu0 0.0
  %236 = vmatpush2.msra.mxu0 0.0
  %237 = vmatprep.subr.mxu0 0.0
  %238 = vmatpush2.msra.mxu0 0.0
  %239 = vmatprep.subr.mxu0 0.0
  %240 = vmatpush2.msra.mxu0 0.0
  %241 = vmatprep.subr.mxu0 0.0
  %242 = vmatpush2.msra.mxu0 0.0
  %243 = vmatprep.subr.mxu0 0.0
  %244 = vmatpush2.msra.mxu0 0.0
  %245 = vmatprep.subr.mxu0 0.0
  %246 = vmatpush2.msra.mxu0 0.0
  %247 = vmatprep.subr.mxu0 0.0
  %248 = vmatpush2.msra.mxu0 0.0
  %249 = vmatprep.subr.mxu0 0.0
  %250 = vmatpush2.msra.mxu0 0.0
  %251 = vmatprep.subr.mxu0 0.0
  %252 = vmatpush2.msra.mxu0 0.0
  %253 = vmatprep.subr.mxu0 0.0
  %254 = vmatpush2.msra.mxu0 0.0
  %255 = vmatprep.subr.mxu0 0.0
  %256 = vmatpush2.msra.mxu0 0.0
  %257 = vmatprep.subr.mxu0 0.0
  %258 = vmatpush2.msra.mxu0 0.0
  %259 = vmatprep.subr.mxu0 0.0
  %260 = vmatpush2.msra.mxu0 0.0
  %261 = vmatprep.mubr.f32.mxu0 0.0
  %262 = vmatmul.mubr.f32.gmra.mxu0 %v195
  %v263 = vpop.f32.mrf.mxu0
  %v264 = vadd.f32 0.0, %v263
  %v265 = vpop.f32.mrf.mxu0
  %266 = vdwg.mxu0
  %v267 = vxor.u32 %v264, 2147483648
  %v268 = vmul.f32 %v267, 1.442695
  %v269 = vpow.pop %v268
  %v270 = vadd.f32 %v269, 1.0
  %v271 = vrcp.pop %v270
  %v272 = vmul.f32 1.0, %v271
  %v273 = vld [vmem:[%s1] sm:$0xff]
  %v274 = vld [vmem:[%s1 + $0x8] sm:$0xff]
  %v275 = vld [vmem:[%s1 + $0x10] sm:$0xff]
  %v276 = vld [vmem:[%s1 + $0x18] sm:$0xff]
  %v277 = vld [vmem:[%s1 + $0x20] sm:$0xff]
  %v278 = vld [vmem:[%s1 + $0x28] sm:$0xff]
  %v279 = vld [vmem:[%s1 + $0x30] sm:$0xff]
  %v280 = vld [vmem:[%s1 + $0x38] sm:$0xff]
  %v281 = vlaneseq
  %v282 = vshrl.u32 %v281, 7
  %v283 = vsub.s32 0, %v282
  %v284 = vrot.slane %v272, %v283
  %286 = vbcast.lane.b32.xlu0 %v284, 256
  %v287 = vpop.permute.xlu0 %286
  %s289 = sor.u32 256, 8
  %290 = vbcast.lane.b32.xlu0 %v284, %s289
  %v291 = vpop.permute.xlu0 %290
  %s293 = sor.u32 256, 16
  %294 = vbcast.lane.b32.xlu0 %v284, %s293
  %v295 = vpop.permute.xlu0 %294
  %s297 = sor.u32 256, 24
  %298 = vbcast.lane.b32.xlu0 %v284, %s297
  %v299 = vpop.permute.xlu0 %298
  %v300 = vlaneseq
  %v301 = vshrl.u32 %v300, 7
  %v302 = vsub.s32 1, %v301
  %v303 = vrot.slane %v272, %v302
  %305 = vbcast.lane.b32.xlu0 %v303, 256
  %v306 = vpop.permute.xlu0 %305
  %s308 = sor.u32 256, 8
  %309 = vbcast.lane.b32.xlu0 %v303, %s308
  %v310 = vpop.permute.xlu0 %309
  %s312 = sor.u32 256, 16
  %313 = vbcast.lane.b32.xlu0 %v303, %s312
  %v314 = vpop.permute.xlu0 %313
  %s316 = sor.u32 256, 24
  %317 = vbcast.lane.b32.xlu0 %v303, %s316
  %v318 = vpop.permute.xlu0 %317
  %v319 = vmul.f32 %v273, %v287
  %v320 = vmul.f32 %v274, %v291
  %v321 = vmul.f32 %v275, %v295
  %v322 = vmul.f32 %v276, %v299
  %v323 = vmul.f32 %v277, %v306
  %v324 = vmul.f32 %v278, %v310
  %v325 = vmul.f32 %v279, %v314
  %v326 = vmul.f32 %v280, %v318
  %327 = vst.msk [vmem:[%s4] sm:$0xff] %vm25, %v319
  %328 = vst.msk [vmem:[%s4 + $0x8] sm:$0xff] %vm25, %v320
  %329 = vst.msk [vmem:[%s4 + $0x10] sm:$0xff] %vm25, %v321
  %330 = vst.msk [vmem:[%s4 + $0x18] sm:$0xff] %vm25, %v322
  %331 = vst.msk [vmem:[%s4 + $0x20] sm:$0xff] %vm25, %v323
  %332 = vst.msk [vmem:[%s4 + $0x28] sm:$0xff] %vm25, %v324
  %333 = vst.msk [vmem:[%s4 + $0x30] sm:$0xff] %vm25, %v325
  %334 = vst.msk [vmem:[%s4 + $0x38] sm:$0xff] %vm25, %v326
  // Predicated region
  $region18: #{tpu_custom_call.1} parent=0 // pred_check
    _
  $region19: #{tpu_custom_call.1} parent=0 // pred_check_branch
    %336 = sbr.rel (0) target = $region21
  $region20: #{tpu_custom_call.1} parent=0 // pred_region
    _
  $region21: #{tpu_custom_call.1} parent=0 // pred_fallthru
    _
  // Predicated region
  $region22: #{tpu_custom_call.1} parent=0 // pred_check
    _
  $region23: #{tpu_custom_call.1} parent=0 // pred_check_branch
    %338 = sbr.rel (0) target = $region25
  $region24: #{tpu_custom_call.1} parent=0 // pred_region
    _
  $region25: #{tpu_custom_call.1} parent=0 // pred_fallthru
    _

</llo_original>
